<compile_context>
chip_gen: v7x
topology: tpu7x:2x2x1
jax: 0.10.0
libtpu: 0.0.40
codegen_flags: <defaults>
</compile_context>

<pallas_src>
import jax
import jax.numpy as jnp
from jax.experimental import pallas as pl
from jax.experimental.pallas import tpu as pltpu


def _leaky_relu(x, slope=0.2):
    return jnp.where(x > 0, x, slope * x)


def _round_up(x, m):
    return int(pl.cdiv(x, m) * m)


def discriminator_kernel(x_ref, w1_ref, b1_ref, w2_ref, b2_ref, w3_ref, b3_ref, o_ref):
    # Layer 1: x @ W1 on the MXU with f32 accumulation; bias + LeakyReLU in f32 on the VPU.
    h1 = jnp.dot(x_ref[...], w1_ref[...], preferred_element_type=jnp.float32) + b1_ref[...]
    h1 = _leaky_relu(h1)
    # Layer 2: f32 matmul + bias + LeakyReLU.
    h2 = jnp.dot(h1, w2_ref[...], preferred_element_type=jnp.float32) + b2_ref[...]
    h2 = _leaky_relu(h2)
    # Layer 3: (1, H2) x (tile_b, H2)^T -> (1, tile_b); logits land on the lane axis,
    # so the output store is a full-lane (unmasked) store instead of a width-1 column.
    logits = jax.lax.dot_general(
        w3_ref[...], h2,
        dimension_numbers=(((1,), (1,)), ((), ())),
        preferred_element_type=jnp.float32,
    ) + b3_ref[...]
    o_ref[...] = logits[None].astype(o_ref.dtype)  # (1, 1, tile_b)


def discriminator_forward(x, params, *, tile_b=1024, x_dtype=None):
    """Discriminator forward pass.

    x:       (B, D) float array.
    params:  dict with w1 (D,H1), b1 (1,H1), w2 (H1,H2), b2 (1,H2), w3 (1,H2), b3 (1,1).
    tile_b:  rows of x per grid step; rounded up to a multiple of 128 and capped at the
             (padded) batch.  On v7x pick tile_b <= B/2 so the parallel grid has >= 2 steps.
    x_dtype: optional storage/DMA dtype for x and w1 (e.g. jnp.bfloat16). Accumulation and
             element-wise math stay in f32.
    """
    B, D = x.shape
    H1 = params["w1"].shape[1]
    H2 = params["w2"].shape[1]

    # Effective batch tile: multiple of 128 (lane-dense output), no bigger than needed.
    tb = _round_up(min(max(int(tile_b), 128), _round_up(B, 128)), 128)
    Bp = _round_up(B, tb)
    n_tiles = Bp // tb

    x_dtype = x.dtype if x_dtype is None else x_dtype
    xp = x.astype(x_dtype)
    if Bp != B:
        xp = jnp.pad(xp, ((0, Bp - B), (0, 0)))
    # Only x / w1 carry the (possibly reduced) DMA dtype; everything downstream stays f32.
    w1 = params["w1"].astype(x_dtype)
    b1 = params["b1"].astype(jnp.float32)
    w2 = params["w2"].astype(jnp.float32)
    b2 = params["b2"].astype(jnp.float32)
    w3 = params["w3"].astype(jnp.float32)
    b3 = params["b3"].astype(jnp.float32)

    elt = jnp.dtype(x_dtype).itemsize
    param_bytes = (w1.size * elt
                   + (b1.size + w2.size + b2.size + w3.size + b3.size) * 4)
    cost = pl.CostEstimate(
        flops=2 * Bp * (D * H1 + H1 * H2 + H2),
        transcendentals=0,
        bytes_accessed=Bp * D * elt + param_bytes + Bp * 4,
    )

    out = pl.pallas_call(
        discriminator_kernel,
        out_shape=jax.ShapeDtypeStruct((n_tiles, 1, tb), jnp.float32),
        grid=(n_tiles,),
        in_specs=[
            pl.BlockSpec((tb, D), lambda i: (i, 0)),    # x tile over batch (HBM-bound)
            pl.BlockSpec((D, H1), lambda i: (0, 0)),    # w1 (resident in VMEM)
            pl.BlockSpec((1, H1), lambda i: (0, 0)),    # b1
            pl.BlockSpec((H1, H2), lambda i: (0, 0)),   # w2
            pl.BlockSpec((1, H2), lambda i: (0, 0)),    # b2
            pl.BlockSpec((1, H2), lambda i: (0, 0)),    # w3 (PyTorch (out=1, in) row)
            pl.BlockSpec((1, 1), lambda i: (0, 0)),     # b3
        ],
        out_specs=pl.BlockSpec((1, 1, tb), lambda i: (i, 0, 0)),  # lane-dense logit row
        compiler_params=pltpu.CompilerParams(
            dimension_semantics=("parallel",)),         # shard grid steps across TCs (v7x)
        cost_estimate=cost,
    )(xp, w1, b1, w2, b2, w3, b3)

    # (n_tiles, 1, tb) in row-major order == logits in batch order; drop padding rows.
    return out.reshape(Bp, 1)[:B]


def init_params(key, input_dim):
    """Deterministic synthetic init matching the nn.Linear shapes of the module."""
    h1 = 2 * input_dim // 3
    h2 = input_dim // 3
    k1, k2, k3, k4, k5, k6 = jax.random.split(key, 6)

    def unif(k, shape, fan_in):
        bound = 1.0 / jnp.sqrt(fan_in)
        return jax.random.uniform(k, shape, jnp.float32, -bound, bound)

    # PyTorch Linear weight is (out, in); w1/w2 stored transposed (in, out); w3 kept (1, in).
    return {
        "w1": unif(k1, (input_dim, h1), input_dim),
        "b1": unif(k2, (1, h1), input_dim),
        "w2": unif(k3, (h1, h2), h1),
        "b2": unif(k4, (1, h2), h1),
        "w3": unif(k5, (1, h2), h2),
        "b3": unif(k6, (1, 1), h2),
    }


def reference_forward(x, p):
    xf = x.astype(jnp.float32)
    h1 = _leaky_relu(xf @ p["w1"] + p["b1"])
    h2 = _leaky_relu(h1 @ p["w2"] + p["b2"])
    return h2 @ p["w3"].T + p["b3"]


if __name__ == "__main__":
    key = jax.random.PRNGKey(0)
    kx, kp, kx2 = jax.random.split(key, 3)

    D = 48  # input_dim -> hidden dims 32 and 16
    params = init_params(kp, D)

    # 1) Small demo batch (f32): single padded 128-row tile, single grid step.
    x_small = jax.random.normal(kx, (16, D), jnp.float32)
    out_small = jax.block_until_ready(discriminator_forward(x_small, params))
    ref_small = reference_forward(x_small, params)
    assert out_small.shape == (16, 1), out_small.shape
    assert jnp.allclose(out_small, ref_small, atol=1e-5, rtol=1e-5), \
        f"f32 small-batch max abs err {jnp.max(jnp.abs(out_small - ref_small))}"

    # 2) Batch not a multiple of the tile (f32): exercises pad + multi-step parallel grid.
    x_big = jax.random.normal(kx2, (300, D), jnp.float32)
    out_big = jax.block_until_ready(discriminator_forward(x_big, params, tile_b=128))
    ref_big = reference_forward(x_big, params)
    assert out_big.shape == (300, 1), out_big.shape
    assert jnp.allclose(out_big, ref_big, atol=1e-5, rtol=1e-5), \
        f"f32 multi-tile max abs err {jnp.max(jnp.abs(out_big - ref_big))}"

    # 3) bf16 DMA path for x/w1 (f32 accumulation + element-wise math), loose tolerance.
    out_bf16 = jax.block_until_ready(
        discriminator_forward(x_big, params, tile_b=128, x_dtype=jnp.bfloat16))
    assert jnp.allclose(out_bf16, ref_big, atol=5e-2, rtol=5e-2), \
        f"bf16 max abs err {jnp.max(jnp.abs(out_bf16 - ref_big))}"

    print("KERNEL_OK")
</pallas_src>

<mosaic_0001>
module attributes {stable_mosaic.version = 11 : i64} {
  func.func @discriminator_kernel(%arg0: i32, %arg1: memref<128x48xf32, #tpu.memory_space<vmem>>, %arg2: memref<48x32xf32, #tpu.memory_space<vmem>>, %arg3: memref<1x32xf32, #tpu.memory_space<vmem>>, %arg4: memref<32x16xf32, #tpu.memory_space<vmem>>, %arg5: memref<1x16xf32, #tpu.memory_space<vmem>>, %arg6: memref<1x16xf32, #tpu.memory_space<vmem>>, %arg7: memref<1x1xf32, #tpu.memory_space<vmem>>, %arg8: memref<1x1x128xf32, #tpu.memory_space<vmem>>) attributes {dimension_semantics = [#tpu.dimension_semantics<parallel>], iteration_bounds = array<i64: 1>, scalar_prefetch = 0 : i64, scratch_operands = 0 : i64, tpu.core_type = #tpu.core_type<tc>, window_params = [{transform_indices = @transform_0, window_bounds = array<i64: 128, 48>}, {pipeline_mode = #tpu.pipeline_mode<synchronous>, transform_indices = @transform_1, window_bounds = array<i64: 48, 32>}, {pipeline_mode = #tpu.pipeline_mode<synchronous>, transform_indices = @transform_2, window_bounds = array<i64: 1, 32>}, {pipeline_mode = #tpu.pipeline_mode<synchronous>, transform_indices = @transform_3, window_bounds = array<i64: 32, 16>}, {pipeline_mode = #tpu.pipeline_mode<synchronous>, transform_indices = @transform_4, window_bounds = array<i64: 1, 16>}, {pipeline_mode = #tpu.pipeline_mode<synchronous>, transform_indices = @transform_5, window_bounds = array<i64: 1, 16>}, {pipeline_mode = #tpu.pipeline_mode<synchronous>, transform_indices = @transform_6, window_bounds = array<i64: 1, 1>}, {transform_indices = @transform_7, window_bounds = array<i64: 1, 1, 128>}]} {
    %c0 = arith.constant 0 : index
    %c0_0 = arith.constant 0 : index
    %0 = vector.load %arg1[%c0, %c0_0] : memref<128x48xf32, #tpu.memory_space<vmem>>, vector<128x48xf32>
    %c0_1 = arith.constant 0 : index
    %c0_2 = arith.constant 0 : index
    %1 = vector.load %arg2[%c0_1, %c0_2] : memref<48x32xf32, #tpu.memory_space<vmem>>, vector<48x32xf32>
    %cst = arith.constant dense<0.000000e+00> : vector<128x32xf32>
    %2 = tpu.matmul %0, %1, %cst {dimension_numbers = #tpu.dot_dimension_numbers<[1], [0], [0], [1], [0, 0, 1, 1], [], []>} : vector<128x48xf32>, vector<48x32xf32>, vector<128x32xf32> -> vector<128x32xf32>
    %c0_3 = arith.constant 0 : index
    %c0_4 = arith.constant 0 : index
    %3 = vector.load %arg3[%c0_3, %c0_4] : memref<1x32xf32, #tpu.memory_space<vmem>>, vector<1x32xf32>
    %4 = vector.broadcast %3 : vector<1x32xf32> to vector<128x32xf32>
    %5 = arith.addf %2, %4 : vector<128x32xf32>
    %cst_5 = arith.constant 0.000000e+00 : f32
    %6 = vector.broadcast %cst_5 : f32 to vector<128x32xf32>
    %7 = arith.cmpf ogt, %5, %6 : vector<128x32xf32>
    %cst_6 = arith.constant 2.000000e-01 : f32
    %8 = vector.broadcast %cst_6 : f32 to vector<128x32xf32>
    %9 = arith.mulf %8, %5 : vector<128x32xf32>
    %10 = arith.select %7, %5, %9 : vector<128x32xi1>, vector<128x32xf32>
    %c0_7 = arith.constant 0 : index
    %c0_8 = arith.constant 0 : index
    %11 = vector.load %arg4[%c0_7, %c0_8] : memref<32x16xf32, #tpu.memory_space<vmem>>, vector<32x16xf32>
    %cst_9 = arith.constant dense<0.000000e+00> : vector<128x16xf32>
    %12 = tpu.matmul %10, %11, %cst_9 {dimension_numbers = #tpu.dot_dimension_numbers<[1], [0], [0], [1], [0, 0, 1, 1], [], []>} : vector<128x32xf32>, vector<32x16xf32>, vector<128x16xf32> -> vector<128x16xf32>
    %c0_10 = arith.constant 0 : index
    %c0_11 = arith.constant 0 : index
    %13 = vector.load %arg5[%c0_10, %c0_11] : memref<1x16xf32, #tpu.memory_space<vmem>>, vector<1x16xf32>
    %14 = vector.broadcast %13 : vector<1x16xf32> to vector<128x16xf32>
    %15 = arith.addf %12, %14 : vector<128x16xf32>
    %cst_12 = arith.constant 0.000000e+00 : f32
    %16 = vector.broadcast %cst_12 : f32 to vector<128x16xf32>
    %17 = arith.cmpf ogt, %15, %16 : vector<128x16xf32>
    %cst_13 = arith.constant 2.000000e-01 : f32
    %18 = vector.broadcast %cst_13 : f32 to vector<128x16xf32>
    %19 = arith.mulf %18, %15 : vector<128x16xf32>
    %20 = arith.select %17, %15, %19 : vector<128x16xi1>, vector<128x16xf32>
    %c0_14 = arith.constant 0 : index
    %c0_15 = arith.constant 0 : index
    %21 = vector.load %arg6[%c0_14, %c0_15] : memref<1x16xf32, #tpu.memory_space<vmem>>, vector<1x16xf32>
    %cst_16 = arith.constant dense<0.000000e+00> : vector<1x128xf32>
    %22 = tpu.matmul %21, %20, %cst_16 {dimension_numbers = #tpu.dot_dimension_numbers<[1], [1], [0], [0], [0, 0, 1, 0], [], []>} : vector<1x16xf32>, vector<128x16xf32>, vector<1x128xf32> -> vector<1x128xf32>
    %c0_17 = arith.constant 0 : index
    %c0_18 = arith.constant 0 : index
    %23 = vector.load %arg7[%c0_17, %c0_18] : memref<1x1xf32, #tpu.memory_space<vmem>>, vector<1x1xf32>
    %24 = vector.broadcast %23 : vector<1x1xf32> to vector<1x128xf32>
    %25 = arith.addf %22, %24 : vector<1x128xf32>
    %26 = vector.shape_cast %25 : vector<1x128xf32> to vector<1x1x128xf32>
    %c0_19 = arith.constant 0 : index
    %c0_20 = arith.constant 0 : index
    %c0_21 = arith.constant 0 : index
    %27 = vector.load %arg8[%c0_19, %c0_20, %c0_21] : memref<1x1x128xf32, #tpu.memory_space<vmem>>, vector<1x1x128xf32>
    tpu.vector_store %arg8[%c0_19, %c0_20, %c0_21], %26 {strides = array<i32>} : memref<1x1x128xf32, #tpu.memory_space<vmem>>, vector<1x1x128xf32>,
    return
  }
  func.func @transform_0(%arg0: i32) -> (i32, i32) {
    %c0_i32 = arith.constant 0 : i32
    %c0_i32_0 = arith.constant 0 : i32
    return %arg0, %c0_i32 : i32, i32
  }
  func.func @transform_1(%arg0: i32) -> (i32, i32) {
    %c0_i32 = arith.constant 0 : i32
    %c0_i32_0 = arith.constant 0 : i32
    %c0_i32_1 = arith.constant 0 : i32
    return %c0_i32, %c0_i32_0 : i32, i32
  }
  func.func @transform_2(%arg0: i32) -> (i32, i32) {
    %c0_i32 = arith.constant 0 : i32
    %c0_i32_0 = arith.constant 0 : i32
    %c0_i32_1 = arith.constant 0 : i32
    return %c0_i32, %c0_i32_0 : i32, i32
  }
  func.func @transform_3(%arg0: i32) -> (i32, i32) {
    %c0_i32 = arith.constant 0 : i32
    %c0_i32_0 = arith.constant 0 : i32
    %c0_i32_1 = arith.constant 0 : i32
    return %c0_i32, %c0_i32_0 : i32, i32
  }
  func.func @transform_4(%arg0: i32) -> (i32, i32) {
    %c0_i32 = arith.constant 0 : i32
    %c0_i32_0 = arith.constant 0 : i32
    %c0_i32_1 = arith.constant 0 : i32
    return %c0_i32, %c0_i32_0 : i32, i32
  }
  func.func @transform_5(%arg0: i32) -> (i32, i32) {
    %c0_i32 = arith.constant 0 : i32
    %c0_i32_0 = arith.constant 0 : i32
    %c0_i32_1 = arith.constant 0 : i32
    return %c0_i32, %c0_i32_0 : i32, i32
  }
  func.func @transform_6(%arg0: i32) -> (i32, i32) {
    %c0_i32 = arith.constant 0 : i32
    %c0_i32_0 = arith.constant 0 : i32
    %c0_i32_1 = arith.constant 0 : i32
    return %c0_i32, %c0_i32_0 : i32, i32
  }
  func.func @transform_7(%arg0: i32) -> (i32, i32, i32) {
    %c0_i32 = arith.constant 0 : i32
    %c0_i32_0 = arith.constant 0 : i32
    %c0_i32_1 = arith.constant 0 : i32
    return %arg0, %c0_i32, %c0_i32_0 : i32, i32, i32
  }
}

</mosaic_0001>

<llo_original>
// kernel: tpu_custom_call.1
$region0: #{tpu_custom_call.1}
  #allocation0 [shape = 'u32[]', space=smem, size = 0x4, offset = 0x4, fixed_abs, tag = 'smem constant byte address 0x4 - core index']
  #allocation1 [shape = 'u32[144,128]{1,0:T(1,128)}', space=vmem, size = 0x12000, scoped, tag = 'internal scratch']
  #allocation2 [shape = 'f32[1,1]{1,0:T(1,128)S(1)}', space=vmem, size = 0x200, scoped, tag = 'scoped memory for tpu_custom_call.1']
  %s0 = inlined_call_operand.vmem [shape: f32[128,48], index: 0, kind: input, shape index: {}]
  %s1 = inlined_call_operand.vmem [shape: f32[48,32], index: 1, kind: input, shape index: {}]
  %s2 = inlined_call_operand.vmem [shape: f32[1,32], index: 2, kind: input, shape index: {}]
  %s3 = inlined_call_operand.vmem [shape: f32[32,16], index: 3, kind: input, shape index: {}]
  %s4 = inlined_call_operand.vmem [shape: f32[1,16], index: 4, kind: input, shape index: {}]
  %s5 = inlined_call_operand.vmem [shape: f32[1,16], index: 5, kind: input, shape index: {}]
  %s6 = inlined_call_operand.<no memory space> [shape: f32[1,1], index: 6, kind: input, shape index: {}]
  %s7 = inlined_call_operand.hbm [shape: f32[1,1,128], index: 7, kind: output, shape index: {}]
  %s8 = sld [smem:[#allocation0]]
  $region38: #{tpu_custom_call.1} parent=0
    _
  %s10 = ssub.s32 1, %s8
  %s11 = scalar_select 0, %s10, %s8
  %v12 = vstv %s6
  %13 = vst [vmem:[#allocation2] sm:$0x1] %v12
  $region1: #{tpu_custom_call.1} parent=0
    #allocation3 [shape = 'u8[512]{0}', space=vmem, size = 0x400, scoped, tag = 'output window, operand 0, single buffered']
    #allocation4 [shape = 's32[1]{0}', space=sflag, size = 0x4, scoped, tag = 'scoped memory for tpu_custom_call.1']
    %14 = vsyncpa [#allocation4], 0
    // Predicated region
    $region2: #{tpu_custom_call.1} parent=1 // pred_check
      _
    $region3: #{tpu_custom_call.1} parent=1 // pred_check_branch
      %16 = sbr.rel (0) target = $region5
    $region4: #{tpu_custom_call.1} parent=1 // pred_region
      _
    $region5: #{tpu_custom_call.1} parent=1 // pred_fallthru
      _
    // Predicated region
    $region6: #{tpu_custom_call.1} parent=1 // pred_check
      _
    $region7: #{tpu_custom_call.1} parent=1 // pred_check_branch
      %18 = sbr.rel (0) target = $region9
    $region8: #{tpu_custom_call.1} parent=1 // pred_region
      _
    $region9: #{tpu_custom_call.1} parent=1 // pred_fallthru
      _
    // Predicated region
    $region10: #{tpu_custom_call.1} parent=1 // pred_check
      _
    $region11: #{tpu_custom_call.1} parent=1 // pred_check_branch
      %20 = sbr.rel (0) target = $region13
    $region12: #{tpu_custom_call.1} parent=1 // pred_region
      _
    $region13: #{tpu_custom_call.1} parent=1 // pred_fallthru
      _
    // Predicated region
    $region14: #{tpu_custom_call.1} parent=1 // pred_check
      _
    $region15: #{tpu_custom_call.1} parent=1 // pred_check_branch
      %22 = sbr.rel (0) target = $region17
    $region16: #{tpu_custom_call.1} parent=1 // pred_region
      _
    $region17: #{tpu_custom_call.1} parent=1 // pred_fallthru
      _
    // Predicated region
    $region18: #{tpu_custom_call.1} parent=1 // pred_check
      _
    $region19: #{tpu_custom_call.1} parent=1 // pred_check_branch
      %24 = sbr.rel (0) target = $region21
    $region20: #{tpu_custom_call.1} parent=1 // pred_region
      _
    $region21: #{tpu_custom_call.1} parent=1 // pred_fallthru
      _
    // Predicated region
    $region22: #{tpu_custom_call.1} parent=1 // pred_check
      _
    $region23: #{tpu_custom_call.1} parent=1 // pred_check_branch
      %26 = sbr.rel (0) target = $region25
    $region24: #{tpu_custom_call.1} parent=1 // pred_region
      _
    $region25: #{tpu_custom_call.1} parent=1 // pred_fallthru
      _
    // Predicated region
    $region26: #{tpu_custom_call.1} parent=1 // pred_check
      _
    $region27: #{tpu_custom_call.1} parent=1 // pred_check_branch
      %28 = sbr.rel (0) target = $region29
    $region28: #{tpu_custom_call.1} parent=1 // pred_region
      _
    $region29: #{tpu_custom_call.1} parent=1 // pred_fallthru
      _
    %v29 = vld [vmem:[%s0] sm:$0xff]
    %v30 = vld [vmem:[%s0 + $0x8] sm:$0xff]
    %v31 = vld [vmem:[%s0 + $0x10] sm:$0xff]
    %v32 = vld [vmem:[%s0 + $0x18] sm:$0xff]
    %v33 = vld [vmem:[%s0 + $0x20] sm:$0xff]
    %v34 = vld [vmem:[%s0 + $0x28] sm:$0xff]
    %v35 = vld [vmem:[%s0 + $0x30] sm:$0xff]
    %v36 = vld [vmem:[%s0 + $0x38] sm:$0xff]
    %v37 = vld [vmem:[%s0 + $0x40] sm:$0xff]
    %v38 = vld [vmem:[%s0 + $0x48] sm:$0xff]
    %v39 = vld [vmem:[%s0 + $0x50] sm:$0xff]
    %v40 = vld [vmem:[%s0 + $0x58] sm:$0xff]
    %v41 = vld [vmem:[%s0 + $0x60] sm:$0xff]
    %v42 = vld [vmem:[%s0 + $0x68] sm:$0xff]
    %v43 = vld [vmem:[%s0 + $0x70] sm:$0xff]
    %v44 = vld [vmem:[%s0 + $0x78] sm:$0xff]
    %v45 = vld [vmem:[%s1] sm:$0xff]
    %v46 = vld [vmem:[%s1 + $0x8] sm:$0xff]
    %v47 = vld [vmem:[%s1 + $0x10] sm:$0xff]
    %v48 = vld [vmem:[%s1 + $0x18] sm:$0xff]
    %v49 = vld [vmem:[%s1 + $0x20] sm:$0xff]
    %v50 = vld [vmem:[%s1 + $0x28] sm:$0xff]
    %v51 = vld [vmem:[%s2] sm:$0x1]
    %v53 = vlaneseq
    %v54 = vshrl.u32 %v53, 7
    %v55 = vsub.s32 0, %v54
    %v56 = vrot.slane %v51, %v55
    %vm58 = vcmask 392192
    %v60 = vsel %vm58, %v29, 0
    %v63 = vsel %vm58, %v30, 0
    %v66 = vsel %vm58, %v31, 0
    %v69 = vsel %vm58, %v32, 0
    %v72 = vsel %vm58, %v33, 0
    %v75 = vsel %vm58, %v34, 0
    %v78 = vsel %vm58, %v35, 0
    %v81 = vsel %vm58, %v36, 0
    %v84 = vsel %vm58, %v37, 0
    %v87 = vsel %vm58, %v38, 0
    %v90 = vsel %vm58, %v39, 0
    %v93 = vsel %vm58, %v40, 0
    %v96 = vsel %vm58, %v41, 0
    %v99 = vsel %vm58, %v42, 0
    %v102 = vsel %vm58, %v43, 0
    %v105 = vsel %vm58, %v44, 0
    %107 = vmatprep.subr.mxu0 0.0
    %108 = vmatpush1.msra.mxu0 %v45
    %109 = vmatprep.subr.mxu0 0.0
    %110 = vmatpush1.msra.mxu0 %v46
    %111 = vmatprep.subr.mxu0 0.0
    %112 = vmatpush1.msra.mxu0 %v47
    %113 = vmatprep.subr.mxu0 0.0
    %114 = vmatpush1.msra.mxu0 %v48
    %115 = vmatprep.subr.mxu0 0.0
    %116 = vmatpush1.msra.mxu0 %v49
    %117 = vmatprep.subr.mxu0 0.0
    %118 = vmatpush1.msra.mxu0 %v50
    %119 = vmatprep.subr.mxu0 0.0
    %120 = vmatpush1.msra.mxu0 0.0
    %121 = vmatprep.subr.mxu0 0.0
    %122 = vmatpush1.msra.mxu0 0.0
    %123 = vmatprep.subr.mxu0 0.0
    %124 = vmatpush1.msra.mxu0 0.0
    %125 = vmatprep.subr.mxu0 0.0
    %126 = vmatpush1.msra.mxu0 0.0
    %127 = vmatprep.subr.mxu0 0.0
    %128 = vmatpush1.msra.mxu0 0.0
    %129 = vmatprep.subr.mxu0 0.0
    %130 = vmatpush1.msra.mxu0 0.0
    %131 = vmatprep.subr.mxu0 0.0
    %132 = vmatpush1.msra.mxu0 0.0
    %133 = vmatprep.subr.mxu0 0.0
    %134 = vmatpush1.msra.mxu0 0.0
    %135 = vmatprep.subr.mxu0 0.0
    %136 = vmatpush1.msra.mxu0 0.0
    %137 = vmatprep.subr.mxu0 0.0
    %138 = vmatpush1.msra.mxu0 0.0
    %139 = vmatprep.subr.mxu0 0.0
    %140 = vmatpush1.msra.mxu0 0.0
    %141 = vmatprep.subr.mxu0 0.0
    %142 = vmatpush1.msra.mxu0 0.0
    %143 = vmatprep.subr.mxu0 0.0
    %144 = vmatpush1.msra.mxu0 0.0
    %145 = vmatprep.subr.mxu0 0.0
    %146 = vmatpush1.msra.mxu0 0.0
    %147 = vmatprep.subr.mxu0 0.0
    %148 = vmatpush1.msra.mxu0 0.0
    %149 = vmatprep.subr.mxu0 0.0
    %150 = vmatpush1.msra.mxu0 0.0
    %151 = vmatprep.subr.mxu0 0.0
    %152 = vmatpush1.msra.mxu0 0.0
    %153 = vmatprep.subr.mxu0 0.0
    %154 = vmatpush1.msra.mxu0 0.0
    %155 = vmatprep.subr.mxu0 0.0
    %156 = vmatpush1.msra.mxu0 0.0
    %157 = vmatprep.subr.mxu0 0.0
    %158 = vmatpush1.msra.mxu0 0.0
    %159 = vmatprep.subr.mxu0 0.0
    %160 = vmatpush1.msra.mxu0 0.0
    %161 = vmatprep.subr.mxu0 0.0
    %162 = vmatpush1.msra.mxu0 0.0
    %163 = vmatprep.subr.mxu0 0.0
    %164 = vmatpush1.msra.mxu0 0.0
    %165 = vmatprep.subr.mxu0 0.0
    %166 = vmatpush1.msra.mxu0 0.0
    %167 = vmatprep.subr.mxu0 0.0
    %168 = vmatpush1.msra.mxu0 0.0
    %169 = vmatprep.subr.mxu0 0.0
    %170 = vmatpush1.msra.mxu0 0.0
    %171 = vmatprep.mubr.f32.mxu0 0.0
    %172 = vmatmul.mubr.f32.gmra.mrb[0].mxu0 %v60
    %v173 = vpop.f32.mrb[0].mxu0
    %v174 = vadd.f32 %v56, %v173
    %v175 = vpop.f32.mrb[0].mxu0
    %176 = vmatprep.mubr.f32.mxu0 0.0
    %177 = vmatmul.mubr.f32.gmra.mrb[0].mxu0 %v63
    %v178 = vpop.f32.mrb[0].mxu0
    %v179 = vadd.f32 %v56, %v178
    %v180 = vpop.f32.mrb[0].mxu0
    %181 = vmatprep.mubr.f32.mxu0 0.0
    %182 = vmatmul.mubr.f32.gmra.mrb[0].mxu0 %v66
    %v183 = vpop.f32.mrb[0].mxu0
    %v184 = vadd.f32 %v56, %v183
    %v185 = vpop.f32.mrb[0].mxu0
    %186 = vmatprep.mubr.f32.mxu0 0.0
    %187 = vmatmul.mubr.f32.gmra.mrb[0].mxu0 %v69
    %v188 = vpop.f32.mrb[0].mxu0
    %v189 = vadd.f32 %v56, %v188
    %v190 = vpop.f32.mrb[0].mxu0
    %191 = vmatprep.mubr.f32.mxu0 0.0
    %192 = vmatmul.mubr.f32.gmra.mrb[0].mxu0 %v72
    %v193 = vpop.f32.mrb[0].mxu0
    %v194 = vadd.f32 %v56, %v193
    %v195 = vpop.f32.mrb[0].mxu0
    %196 = vmatprep.mubr.f32.mxu0 0.0
    %197 = vmatmul.mubr.f32.gmra.mrb[0].mxu0 %v75
    %v198 = vpop.f32.mrb[0].mxu0
    %v199 = vadd.f32 %v56, %v198
    %v200 = vpop.f32.mrb[0].mxu0
    %201 = vmatprep.mubr.f32.mxu0 0.0
    %202 = vmatmul.mubr.f32.gmra.mrb[0].mxu0 %v78
    %v203 = vpop.f32.mrb[0].mxu0
    %v204 = vadd.f32 %v56, %v203
    %v205 = vpop.f32.mrb[0].mxu0
    %206 = vmatprep.mubr.f32.mxu0 0.0
    %207 = vmatmul.mubr.f32.gmra.mrb[0].mxu0 %v81
    %v208 = vpop.f32.mrb[0].mxu0
    %v209 = vadd.f32 %v56, %v208
    %v210 = vpop.f32.mrb[0].mxu0
    %211 = vmatprep.mubr.f32.mxu0 0.0
    %212 = vmatmul.mubr.f32.gmra.mrb[0].mxu0 %v84
    %v213 = vpop.f32.mrb[0].mxu0
    %v214 = vadd.f32 %v56, %v213
    %v215 = vpop.f32.mrb[0].mxu0
    %216 = vmatprep.mubr.f32.mxu0 0.0
    %217 = vmatmul.mubr.f32.gmra.mrb[0].mxu0 %v87
    %v218 = vpop.f32.mrb[0].mxu0
    %v219 = vadd.f32 %v56, %v218
    %v220 = vpop.f32.mrb[0].mxu0
    %221 = vmatprep.mubr.f32.mxu0 0.0
    %222 = vmatmul.mubr.f32.gmra.mrb[0].mxu0 %v90
    %v223 = vpop.f32.mrb[0].mxu0
    %v224 = vadd.f32 %v56, %v223
    %v225 = vpop.f32.mrb[0].mxu0
    %226 = vmatprep.mubr.f32.mxu0 0.0
    %227 = vmatmul.mubr.f32.gmra.mrb[0].mxu0 %v93
    %v228 = vpop.f32.mrb[0].mxu0
    %v229 = vadd.f32 %v56, %v228
    %v230 = vpop.f32.mrb[0].mxu0
    %231 = vmatprep.mubr.f32.mxu0 0.0
    %232 = vmatmul.mubr.f32.gmra.mrb[0].mxu0 %v96
    %v233 = vpop.f32.mrb[0].mxu0
    %v234 = vadd.f32 %v56, %v233
    %v235 = vpop.f32.mrb[0].mxu0
    %236 = vmatprep.mubr.f32.mxu0 0.0
    %237 = vmatmul.mubr.f32.gmra.mrb[0].mxu0 %v99
    %v238 = vpop.f32.mrb[0].mxu0
    %v239 = vadd.f32 %v56, %v238
    %v240 = vpop.f32.mrb[0].mxu0
    %241 = vmatprep.mubr.f32.mxu0 0.0
    %242 = vmatmul.mubr.f32.gmra.mrb[0].mxu0 %v102
    %v243 = vpop.f32.mrb[0].mxu0
    %v244 = vadd.f32 %v56, %v243
    %v245 = vpop.f32.mrb[0].mxu0
    %246 = vmatprep.mubr.f32.mxu0 0.0
    %247 = vmatmul.mubr.f32.gmra.mrb[0].mxu0 %v105
    %v248 = vpop.f32.mrb[0].mxu0
    %v249 = vadd.f32 %v56, %v248
    %v250 = vpop.f32.mrb[0].mxu0
    %251 = vdwg.mxu0
    %vm252 = vcmp.gt.f32.partialorder %v174, 0.0
    %vm253 = vcmp.gt.f32.partialorder %v179, 0.0
    %vm254 = vcmp.gt.f32.partialorder %v184, 0.0
    %vm255 = vcmp.gt.f32.partialorder %v189, 0.0
    %vm256 = vcmp.gt.f32.partialorder %v194, 0.0
    %vm257 = vcmp.gt.f32.partialorder %v199, 0.0
    %vm258 = vcmp.gt.f32.partialorder %v204, 0.0
    %vm259 = vcmp.gt.f32.partialorder %v209, 0.0
    %vm260 = vcmp.gt.f32.partialorder %v214, 0.0
    %vm261 = vcmp.gt.f32.partialorder %v219, 0.0
    %vm262 = vcmp.gt.f32.partialorder %v224, 0.0
    %vm263 = vcmp.gt.f32.partialorder %v229, 0.0
    %vm264 = vcmp.gt.f32.partialorder %v234, 0.0
    %vm265 = vcmp.gt.f32.partialorder %v239, 0.0
    %vm266 = vcmp.gt.f32.partialorder %v244, 0.0
    %vm267 = vcmp.gt.f32.partialorder %v249, 0.0
    %v268 = vmul.f32 %v174, 0.2
    %v269 = vmul.f32 %v179, 0.2
    %v270 = vmul.f32 %v184, 0.2
    %v271 = vmul.f32 %v189, 0.2
    %v272 = vmul.f32 %v194, 0.2
    %v273 = vmul.f32 %v199, 0.2
    %v274 = vmul.f32 %v204, 0.2
    %v275 = vmul.f32 %v209, 0.2
    %v276 = vmul.f32 %v214, 0.2
    %v277 = vmul.f32 %v219, 0.2
    %v278 = vmul.f32 %v224, 0.2
    %v279 = vmul.f32 %v229, 0.2
    %v280 = vmul.f32 %v234, 0.2
    %v281 = vmul.f32 %v239, 0.2
    %v282 = vmul.f32 %v244, 0.2
    %v283 = vmul.f32 %v249, 0.2
    %v284 = vsel %vm252, %v174, %v268
    %v285 = vsel %vm253, %v179, %v269
    %v286 = vsel %vm254, %v184, %v270
    %v287 = vsel %vm255, %v189, %v271
    %v288 = vsel %vm256, %v194, %v272
    %v289 = vsel %vm257, %v199, %v273
    %v290 = vsel %vm258, %v204, %v274
    %v291 = vsel %vm259, %v209, %v275
    %v292 = vsel %vm260, %v214, %v276
    %v293 = vsel %vm261, %v219, %v277
    %v294 = vsel %vm262, %v224, %v278
    %v295 = vsel %vm263, %v229, %v279
    %v296 = vsel %vm264, %v234, %v280
    %v297 = vsel %vm265, %v239, %v281
    %v298 = vsel %vm266, %v244, %v282
    %v299 = vsel %vm267, %v249, %v283
    %v300 = vld [vmem:[%s3] sm:$0xff]
    %v301 = vld [vmem:[%s3 + $0x8] sm:$0xff]
    %v302 = vld [vmem:[%s3 + $0x10] sm:$0xff]
    %v303 = vld [vmem:[%s3 + $0x18] sm:$0xff]
    %v304 = vld [vmem:[%s4] sm:$0x1]
    %v306 = vlaneseq
    %v307 = vshrl.u32 %v306, 7
    %v308 = vsub.s32 0, %v307
    %v309 = vrot.slane %v304, %v308
    %vm311 = vcmask 261120
    %v313 = vsel %vm311, %v284, 0
    %v316 = vsel %vm311, %v285, 0
    %v319 = vsel %vm311, %v286, 0
    %v322 = vsel %vm311, %v287, 0
    %v325 = vsel %vm311, %v288, 0
    %v328 = vsel %vm311, %v289, 0
    %v331 = vsel %vm311, %v290, 0
    %v334 = vsel %vm311, %v291, 0
    %v337 = vsel %vm311, %v292, 0
    %v340 = vsel %vm311, %v293, 0
    %v343 = vsel %vm311, %v294, 0
    %v346 = vsel %vm311, %v295, 0
    %v349 = vsel %vm311, %v296, 0
    %v352 = vsel %vm311, %v297, 0
    %v355 = vsel %vm311, %v298, 0
    %v358 = vsel %vm311, %v299, 0
    %360 = vmatprep.subr.mxu0 0.0
    %361 = vmatpush1.msra.mxu0 %v300
    %362 = vmatprep.subr.mxu0 0.0
    %363 = vmatpush1.msra.mxu0 %v301
    %364 = vmatprep.subr.mxu0 0.0
    %365 = vmatpush1.msra.mxu0 %v302
    %366 = vmatprep.subr.mxu0 0.0
    %367 = vmatpush1.msra.mxu0 %v303
    %368 = vmatprep.subr.mxu0 0.0
    %369 = vmatpush1.msra.mxu0 0.0
    %370 = vmatprep.subr.mxu0 0.0
    %371 = vmatpush1.msra.mxu0 0.0
    %372 = vmatprep.subr.mxu0 0.0
    %373 = vmatpush1.msra.mxu0 0.0
    %374 = vmatprep.subr.mxu0 0.0
    %375 = vmatpush1.msra.mxu0 0.0
    %376 = vmatprep.subr.mxu0 0.0
    %377 = vmatpush1.msra.mxu0 0.0
    %378 = vmatprep.subr.mxu0 0.0
    %379 = vmatpush1.msra.mxu0 0.0
    %380 = vmatprep.subr.mxu0 0.0
    %381 = vmatpush1.msra.mxu0 0.0
    %382 = vmatprep.subr.mxu0 0.0
    %383 = vmatpush1.msra.mxu0 0.0
    %384 = vmatprep.subr.mxu0 0.0
    %385 = vmatpush1.msra.mxu0 0.0
    %386 = vmatprep.subr.mxu0 0.0
    %387 = vmatpush1.msra.mxu0 0.0
    %388 = vmatprep.subr.mxu0 0.0
    %389 = vmatpush1.msra.mxu0 0.0
    %390 = vmatprep.subr.mxu0 0.0
    %391 = vmatpush1.msra.mxu0 0.0
    %392 = vmatprep.subr.mxu0 0.0
    %393 = vmatpush1.msra.mxu0 0.0
    %394 = vmatprep.subr.mxu0 0.0
    %395 = vmatpush1.msra.mxu0 0.0
    %396 = vmatprep.subr.mxu0 0.0
    %397 = vmatpush1.msra.mxu0 0.0
    %398 = vmatprep.subr.mxu0 0.0
    %399 = vmatpush1.msra.mxu0 0.0
    %400 = vmatprep.subr.mxu0 0.0
    %401 = vmatpush1.msra.mxu0 0.0
    %402 = vmatprep.subr.mxu0 0.0
    %403 = vmatpush1.msra.mxu0 0.0
    %404 = vmatprep.subr.mxu0 0.0
    %405 = vmatpush1.msra.mxu0 0.0
    %406 = vmatprep.subr.mxu0 0.0
    %407 = vmatpush1.msra.mxu0 0.0
    %408 = vmatprep.subr.mxu0 0.0
    %409 = vmatpush1.msra.mxu0 0.0
    %410 = vmatprep.subr.mxu0 0.0
    %411 = vmatpush1.msra.mxu0 0.0
    %412 = vmatprep.subr.mxu0 0.0
    %413 = vmatpush1.msra.mxu0 0.0
    %414 = vmatprep.subr.mxu0 0.0
    %415 = vmatpush1.msra.mxu0 0.0
    %416 = vmatprep.subr.mxu0 0.0
    %417 = vmatpush1.msra.mxu0 0.0
    %418 = vmatprep.subr.mxu0 0.0
    %419 = vmatpush1.msra.mxu0 0.0
    %420 = vmatprep.subr.mxu0 0.0
    %421 = vmatpush1.msra.mxu0 0.0
    %422 = vmatprep.subr.mxu0 0.0
    %423 = vmatpush1.msra.mxu0 0.0
    %424 = vmatprep.mubr.f32.mxu0 0.0
    %425 = vmatmul.mubr.f32.gmra.mrb[0].mxu0 %v313
    %v426 = vpop.f32.mrb[0].mxu0
    %v427 = vadd.f32 %v309, %v426
    %v428 = vpop.f32.mrb[0].mxu0
    %429 = vmatprep.mubr.f32.mxu0 0.0
    %430 = vmatmul.mubr.f32.gmra.mrb[0].mxu0 %v316
    %v431 = vpop.f32.mrb[0].mxu0
    %v432 = vadd.f32 %v309, %v431
    %v433 = vpop.f32.mrb[0].mxu0
    %434 = vmatprep.mubr.f32.mxu0 0.0
    %435 = vmatmul.mubr.f32.gmra.mrb[0].mxu0 %v319
    %v436 = vpop.f32.mrb[0].mxu0
    %v437 = vadd.f32 %v309, %v436
    %v438 = vpop.f32.mrb[0].mxu0
    %439 = vmatprep.mubr.f32.mxu0 0.0
    %440 = vmatmul.mubr.f32.gmra.mrb[0].mxu0 %v322
    %v441 = vpop.f32.mrb[0].mxu0
    %v442 = vadd.f32 %v309, %v441
    %v443 = vpop.f32.mrb[0].mxu0
    %444 = vmatprep.mubr.f32.mxu0 0.0
    %445 = vmatmul.mubr.f32.gmra.mrb[0].mxu0 %v325
    %v446 = vpop.f32.mrb[0].mxu0
    %v447 = vadd.f32 %v309, %v446
    %v448 = vpop.f32.mrb[0].mxu0
    %449 = vmatprep.mubr.f32.mxu0 0.0
    %450 = vmatmul.mubr.f32.gmra.mrb[0].mxu0 %v328
    %v451 = vpop.f32.mrb[0].mxu0
    %v452 = vadd.f32 %v309, %v451
    %v453 = vpop.f32.mrb[0].mxu0
    %454 = vmatprep.mubr.f32.mxu0 0.0
    %455 = vmatmul.mubr.f32.gmra.mrb[0].mxu0 %v331
    %v456 = vpop.f32.mrb[0].mxu0
    %v457 = vadd.f32 %v309, %v456
    %v458 = vpop.f32.mrb[0].mxu0
    %459 = vmatprep.mubr.f32.mxu0 0.0
    %460 = vmatmul.mubr.f32.gmra.mrb[0].mxu0 %v334
    %v461 = vpop.f32.mrb[0].mxu0
    %v462 = vadd.f32 %v309, %v461
    %v463 = vpop.f32.mrb[0].mxu0
    %464 = vmatprep.mubr.f32.mxu0 0.0
    %465 = vmatmul.mubr.f32.gmra.mrb[0].mxu0 %v337
    %v466 = vpop.f32.mrb[0].mxu0
    %v467 = vadd.f32 %v309, %v466
    %v468 = vpop.f32.mrb[0].mxu0
    %469 = vmatprep.mubr.f32.mxu0 0.0
    %470 = vmatmul.mubr.f32.gmra.mrb[0].mxu0 %v340
    %v471 = vpop.f32.mrb[0].mxu0
    %v472 = vadd.f32 %v309, %v471
    %v473 = vpop.f32.mrb[0].mxu0
    %474 = vmatprep.mubr.f32.mxu0 0.0
    %475 = vmatmul.mubr.f32.gmra.mrb[0].mxu0 %v343
    %v476 = vpop.f32.mrb[0].mxu0
    %v477 = vadd.f32 %v309, %v476
    %v478 = vpop.f32.mrb[0].mxu0
    %479 = vmatprep.mubr.f32.mxu0 0.0
    %480 = vmatmul.mubr.f32.gmra.mrb[0].mxu0 %v346
    %v481 = vpop.f32.mrb[0].mxu0
    %v482 = vadd.f32 %v309, %v481
    %v483 = vpop.f32.mrb[0].mxu0
    %484 = vmatprep.mubr.f32.mxu0 0.0
    %485 = vmatmul.mubr.f32.gmra.mrb[0].mxu0 %v349
    %v486 = vpop.f32.mrb[0].mxu0
    %v487 = vadd.f32 %v309, %v486
    %v488 = vpop.f32.mrb[0].mxu0
    %489 = vmatprep.mubr.f32.mxu0 0.0
    %490 = vmatmul.mubr.f32.gmra.mrb[0].mxu0 %v352
    %v491 = vpop.f32.mrb[0].mxu0
    %v492 = vadd.f32 %v309, %v491
    %v493 = vpop.f32.mrb[0].mxu0
    %494 = vmatprep.mubr.f32.mxu0 0.0
    %495 = vmatmul.mubr.f32.gmra.mrb[0].mxu0 %v355
    %v496 = vpop.f32.mrb[0].mxu0
    %v497 = vadd.f32 %v309, %v496
    %v498 = vpop.f32.mrb[0].mxu0
    %499 = vmatprep.mubr.f32.mxu0 0.0
    %500 = vmatmul.mubr.f32.gmra.mrb[0].mxu0 %v358
    %v501 = vpop.f32.mrb[0].mxu0
    %v502 = vadd.f32 %v309, %v501
    %v503 = vpop.f32.mrb[0].mxu0
    %504 = vdwg.mxu0
    %vm505 = vcmp.gt.f32.partialorder %v427, 0.0
    %vm506 = vcmp.gt.f32.partialorder %v432, 0.0
    %vm507 = vcmp.gt.f32.partialorder %v437, 0.0
    %vm508 = vcmp.gt.f32.partialorder %v442, 0.0
    %vm509 = vcmp.gt.f32.partialorder %v447, 0.0
    %vm510 = vcmp.gt.f32.partialorder %v452, 0.0
    %vm511 = vcmp.gt.f32.partialorder %v457, 0.0
    %vm512 = vcmp.gt.f32.partialorder %v462, 0.0
    %vm513 = vcmp.gt.f32.partialorder %v467, 0.0
    %vm514 = vcmp.gt.f32.partialorder %v472, 0.0
    %vm515 = vcmp.gt.f32.partialorder %v477, 0.0
    %vm516 = vcmp.gt.f32.partialorder %v482, 0.0
    %vm517 = vcmp.gt.f32.partialorder %v487, 0.0
    %vm518 = vcmp.gt.f32.partialorder %v492, 0.0
    %vm519 = vcmp.gt.f32.partialorder %v497, 0.0
    %vm520 = vcmp.gt.f32.partialorder %v502, 0.0
    %v521 = vmul.f32 %v427, 0.2
    %v522 = vmul.f32 %v432, 0.2
    %v523 = vmul.f32 %v437, 0.2
    %v524 = vmul.f32 %v442, 0.2
    %v525 = vmul.f32 %v447, 0.2
    %v526 = vmul.f32 %v452, 0.2
    %v527 = vmul.f32 %v457, 0.2
    %v528 = vmul.f32 %v462, 0.2
    %v529 = vmul.f32 %v467, 0.2
    %v530 = vmul.f32 %v472, 0.2
    %v531 = vmul.f32 %v477, 0.2
    %v532 = vmul.f32 %v482, 0.2
    %v533 = vmul.f32 %v487, 0.2
    %v534 = vmul.f32 %v492, 0.2
    %v535 = vmul.f32 %v497, 0.2
    %v536 = vmul.f32 %v502, 0.2
    %v537 = vsel %vm505, %v427, %v521
    %v538 = vsel %vm506, %v432, %v522
    %v539 = vsel %vm507, %v437, %v523
    %v540 = vsel %vm508, %v442, %v524
    %v541 = vsel %vm509, %v447, %v525
    %v542 = vsel %vm510, %v452, %v526
    %v543 = vsel %vm511, %v457, %v527
    %v544 = vsel %vm512, %v462, %v528
    %v545 = vsel %vm513, %v467, %v529
    %v546 = vsel %vm514, %v472, %v530
    %v547 = vsel %vm515, %v477, %v531
    %v548 = vsel %vm516, %v482, %v532
    %v549 = vsel %vm517, %v487, %v533
    %v550 = vsel %vm518, %v492, %v534
    %v551 = vsel %vm519, %v497, %v535
    %v552 = vsel %vm520, %v502, %v536
    %v553 = vld [vmem:[%s5] sm:$0x1]
    %v554 = vld [vmem:[#allocation2] sm:$0x1]
    %556 = vset.pattern.permute.xlu0 0
    %557 = vperm.xlu0 %556, %v554
    %v558 = vpop.permute.xlu0 %557
    %v560 = vlaneseq
    %v561 = vshrl.u32 %v560, 7
    %v562 = vsub.s32 0, %v561
    %v563 = vrot.slane %v558, %v562
    %vm564 = vcmask 130048
    %v566 = vsel %vm564, %v553, 0
    %v569 = vsel %vm564, %v537, 0
    %v572 = vsel %vm564, %v538, 0
    %v575 = vsel %vm564, %v539, 0
    %v578 = vsel %vm564, %v540, 0
    %v581 = vsel %vm564, %v541, 0
    %v584 = vsel %vm564, %v542, 0
    %v587 = vsel %vm564, %v543, 0
    %v590 = vsel %vm564, %v544, 0
    %v593 = vsel %vm564, %v545, 0
    %v596 = vsel %vm564, %v546, 0
    %v599 = vsel %vm564, %v547, 0
    %v602 = vsel %vm564, %v548, 0
    %v605 = vsel %vm564, %v549, 0
    %v608 = vsel %vm564, %v550, 0
    %v611 = vsel %vm564, %v551, 0
    %v614 = vsel %vm564, %v552, 0
    %616 = vmatprep.subr.mxu0 0.0
    %617 = vmatpush1.xpose.msra.mxu0 %v569
    %618 = vmatprep.subr.mxu0 0.0
    %619 = vmatpush1.xpose.msra.mxu0 %v572
    %620 = vmatprep.subr.mxu0 0.0
    %621 = vmatpush1.xpose.msra.mxu0 %v575
    %622 = vmatprep.subr.mxu0 0.0
    %623 = vmatpush1.xpose.msra.mxu0 %v578
    %624 = vmatprep.subr.mxu0 0.0
    %625 = vmatpush1.xpose.msra.mxu0 %v581
    %626 = vmatprep.subr.mxu0 0.0
    %627 = vmatpush1.xpose.msra.mxu0 %v584
    %628 = vmatprep.subr.mxu0 0.0
    %629 = vmatpush1.xpose.msra.mxu0 %v587
    %630 = vmatprep.subr.mxu0 0.0
    %631 = vmatpush1.xpose.msra.mxu0 %v590
    %632 = vmatprep.subr.mxu0 0.0
    %633 = vmatpush1.xpose.msra.mxu0 %v593
    %634 = vmatprep.subr.mxu0 0.0
    %635 = vmatpush1.xpose.msra.mxu0 %v596
    %636 = vmatprep.subr.mxu0 0.0
    %637 = vmatpush1.xpose.msra.mxu0 %v599
    %638 = vmatprep.subr.mxu0 0.0
    %639 = vmatpush1.xpose.msra.mxu0 %v602
    %640 = vmatprep.subr.mxu0 0.0
    %641 = vmatpush1.xpose.msra.mxu0 %v605
    %642 = vmatprep.subr.mxu0 0.0
    %643 = vmatpush1.xpose.msra.mxu0 %v608
    %644 = vmatprep.subr.mxu0 0.0
    %645 = vmatpush1.xpose.msra.mxu0 %v611
    %646 = vmatprep.subr.mxu0 0.0
    %647 = vmatpush1.xpose.msra.mxu0 %v614
    %648 = vmatprep.subr.mxu0 0.0
    %649 = vmatpush1.xpose.msra.mxu0 0.0
    %650 = vmatprep.subr.mxu0 0.0
    %651 = vmatpush1.xpose.msra.mxu0 0.0
    %652 = vmatprep.subr.mxu0 0.0
    %653 = vmatpush1.xpose.msra.mxu0 0.0
    %654 = vmatprep.subr.mxu0 0.0
    %655 = vmatpush1.xpose.msra.mxu0 0.0
    %656 = vmatprep.subr.mxu0 0.0
    %657 = vmatpush1.xpose.msra.mxu0 0.0
    %658 = vmatprep.subr.mxu0 0.0
    %659 = vmatpush1.xpose.msra.mxu0 0.0
    %660 = vmatprep.subr.mxu0 0.0
    %661 = vmatpush1.xpose.msra.mxu0 0.0
    %662 = vmatprep.subr.mxu0 0.0
    %663 = vmatpush1.xpose.msra.mxu0 0.0
    %664 = vmatprep.subr.mxu0 0.0
    %665 = vmatpush1.xpose.msra.mxu0 0.0
    %666 = vmatprep.subr.mxu0 0.0
    %667 = vmatpush1.xpose.msra.mxu0 0.0
    %668 = vmatprep.subr.mxu0 0.0
    %669 = vmatpush1.xpose.msra.mxu0 0.0
    %670 = vmatprep.subr.mxu0 0.0
    %671 = vmatpush1.xpose.msra.mxu0 0.0
    %672 = vmatprep.subr.mxu0 0.0
    %673 = vmatpush1.xpose.msra.mxu0 0.0
    %674 = vmatprep.subr.mxu0 0.0
    %675 = vmatpush1.xpose.msra.mxu0 0.0
    %676 = vmatprep.subr.mxu0 0.0
    %677 = vmatpush1.xpose.msra.mxu0 0.0
    %678 = vmatprep.subr.mxu0 0.0
    %679 = vmatpush1.xpose.msra.mxu0 0.0
    %680 = vmatprep.mubr.f32.mxu0 0.0
    %681 = vmatmul.mubr.f32.gmra.mrb[0].mxu0 %v566
    %v682 = vpop.f32.mrb[0].mxu0
    %v683 = vadd.f32 %v563, %v682
    %v684 = vpop.f32.mrb[0].mxu0
    %685 = vdwg.mxu0
    %686 = vst [vmem:[#allocation3] sm:$0x1] %v683
    // Predicated region
    $region30: #{tpu_custom_call.1} parent=1 // pred_check
      _
    $region31: #{tpu_custom_call.1} parent=1 // pred_check_branch
      %688 = sbr.rel (0) target = $region33
    $region32: #{tpu_custom_call.1} parent=1 // pred_region
      %s690 = ssub.s32 16, 16
      %691 = vsyncadd [#allocation4], %s690
      %s693 = sshll.u32 [#allocation3], 4
      %s694 = int_to_ptr.vmem [resolvable:$true] %s693
      %696 = dma.vmem_to_hbm [thread:$0]  %s694, 16, %s7, [#allocation4]
    $region33: #{tpu_custom_call.1} parent=1 // pred_fallthru
      _
    // Predicated region
    $region34: #{tpu_custom_call.1} parent=1 // pred_check
      _
    $region35: #{tpu_custom_call.1} parent=1 // pred_check_branch
      %698 = sbr.rel (0) target = $region37
    $region36: #{tpu_custom_call.1} parent=1 // pred_region
      %699 = dma.done [#allocation4], 16
    $region37: #{tpu_custom_call.1} parent=1 // pred_fallthru
      _
    %700 = vsyncpa [#allocation4], 1

</llo_original>
